<compile_context>
chip_gen: v7x
topology: tpu7x:2x2x1
jax: 0.10.0
libtpu: 0.0.40
codegen_flags: <defaults>
</compile_context>

<pallas_src>
import functools

import jax
import jax.numpy as jnp
from jax.experimental import pallas as pl
from jax.experimental.pallas import tpu as pltpu

BN_EPS = 1e-5


def basic_conv1d_kernel(w_ref, p_ref, gamma_ref, beta_ref, o_ref, *,
                        inv_count):
    """Fused im2col-matmul conv + train-mode BatchNorm1d + ReLU.

    w_ref     : (C_out, C_in*K)   f32   reshaped conv weight
    p_ref     : (C_in*K, NL_pad)  f32   im2col patches, lane axis = N*L_out (padded)
    gamma_ref : (C_out, 1)        f32
    beta_ref  : (C_out, 1)        f32
    o_ref     : (C_out, NL_pad)   f32
    inv_count : static 1 / (N * L_out)  (true, unpadded count)
    """
    # --- Conv1d as one MXU matmul: contraction dim = C_in*K ---
    acc = jnp.dot(w_ref[...], p_ref[...],
                  preferred_element_type=jnp.float32)      # (C_out, NL_pad)

    # --- BatchNorm1d, biased batch stats, one pass over acc ---
    # Padded columns are exactly zero, so they drop out of both sums.
    row_sum = jnp.sum(acc, axis=-1, keepdims=True)          # (C_out, 1)
    row_sq = jnp.sum(acc * acc, axis=-1, keepdims=True)     # (C_out, 1)
    mean = row_sum * inv_count
    var = jnp.maximum(row_sq * inv_count - mean * mean, 0.0)
    inv_std = jax.lax.rsqrt(var + BN_EPS)

    scale = gamma_ref[...] * inv_std                        # (C_out, 1)
    shift = beta_ref[...] - mean * scale
    y = acc * scale + shift                                 # lane-broadcast

    # --- ReLU + lane-dense store ---
    o_ref[...] = jnp.maximum(y, 0.0).astype(o_ref.dtype)


def basic_conv1d(x, w, gamma, beta):
    """x: (N, C_in, L_in) f32, w: (C_out, C_in, K) f32, gamma/beta: (C_out,).

    Returns (N, C_out, L_out) with L_out = L_in - K + 1 (stride=1, no pad),
    matching PyTorch BasicConv1d forward in training mode.
    """
    N, C_in, L_in = x.shape
    C_out, _, K = w.shape
    L_out = L_in - K + 1
    NL = N * L_out
    NL_pad = pl.cdiv(NL, 128) * 128                         # lane-dense last dim

    # --- im2col (wrapper-side layout plumbing, outside the kernel) ---
    # patches[c*K + k, n*L_out + l] = x[n, c, l + k]
    cols = jnp.stack([x[:, :, k:k + L_out] for k in range(K)], axis=2)
    patches = cols.transpose(1, 2, 0, 3).reshape(C_in * K, NL)
    patches = jnp.pad(patches, ((0, 0), (0, NL_pad - NL)))

    w2 = w.reshape(C_out, C_in * K)
    gamma2d = gamma.reshape(C_out, 1).astype(jnp.float32)
    beta2d = beta.reshape(C_out, 1).astype(jnp.float32)

    kernel = functools.partial(basic_conv1d_kernel, inv_count=1.0 / NL)

    flops = 2 * C_out * (C_in * K) * NL_pad + 8 * C_out * NL_pad
    bytes_accessed = 4 * (w2.size + patches.size + 2 * C_out + C_out * NL_pad)

    out2 = pl.pallas_call(
        kernel,
        out_shape=jax.ShapeDtypeStruct((C_out, NL_pad), x.dtype),
        grid=(1,),
        in_specs=[
            pl.BlockSpec((C_out, C_in * K), lambda i: (0, 0)),
            pl.BlockSpec((C_in * K, NL_pad), lambda i: (0, 0)),
            pl.BlockSpec((C_out, 1), lambda i: (0, 0)),
            pl.BlockSpec((C_out, 1), lambda i: (0, 0)),
        ],
        out_specs=pl.BlockSpec((C_out, NL_pad), lambda i: (0, 0)),
        compiler_params=pltpu.CompilerParams(
            dimension_semantics=("arbitrary",)),
        cost_estimate=pl.CostEstimate(
            flops=flops,
            transcendentals=C_out,
            bytes_accessed=bytes_accessed),
    )(w2, patches, gamma2d, beta2d)

    # Drop lane padding and restore (N, C_out, L_out).
    out = out2[:, :NL].reshape(C_out, N, L_out).transpose(1, 0, 2)
    return out


def reference(x, w, gamma, beta):
    """Pure-JAX reference matching PyTorch BasicConv1d forward (train-mode BN)."""
    y = jax.lax.conv_general_dilated(
        x, w, window_strides=(1,), padding="VALID",
        dimension_numbers=("NCH", "OIH", "NCH"))
    mean = y.mean(axis=(0, 2), keepdims=True)
    var = ((y - mean) ** 2).mean(axis=(0, 2), keepdims=True)
    y_hat = (y - mean) / jnp.sqrt(var + BN_EPS)
    out = y_hat * gamma.reshape(1, -1, 1) + beta.reshape(1, -1, 1)
    return jnp.maximum(out, 0.0)


if __name__ == "__main__":
    # Small shapes consistent with Conv1d: batch=2, C_in=4, L=16, C_out=8, K=3
    N, C_IN, L_IN = 2, 4, 16
    C_OUT, K = 8, 3

    key = jax.random.PRNGKey(0)
    kx, kw, kg, kb = jax.random.split(key, 4)
    x = jax.random.normal(kx, (N, C_IN, L_IN), dtype=jnp.float32)
    w = jax.random.normal(kw, (C_OUT, C_IN, K), dtype=jnp.float32) * (
        1.0 / jnp.sqrt(C_IN * K))
    gamma = 1.0 + 0.1 * jax.random.normal(kg, (C_OUT,), dtype=jnp.float32)
    beta = 0.1 * jax.random.normal(kb, (C_OUT,), dtype=jnp.float32)

    out = basic_conv1d(x, w, gamma, beta)
    out = jax.block_until_ready(out)

    ref = reference(x, w, gamma, beta)
    assert out.shape == (N, C_OUT, L_IN - K + 1), out.shape
    assert jnp.allclose(out, ref, atol=1e-4, rtol=1e-4), (
        "mismatch vs reference: max abs err = "
        f"{float(jnp.max(jnp.abs(out - ref)))}")

    print("KERNEL_OK")
</pallas_src>

<mosaic_0001>
module attributes {stable_mosaic.version = 11 : i64} {
  func.func @basic_conv1d_kernel(%arg0: i32, %arg1: memref<8x12xf32, #tpu.memory_space<vmem>>, %arg2: memref<12x128xf32, #tpu.memory_space<vmem>>, %arg3: memref<8x1xf32, #tpu.memory_space<vmem>>, %arg4: memref<8x1xf32, #tpu.memory_space<vmem>>, %arg5: memref<8x128xf32, #tpu.memory_space<vmem>>) attributes {dimension_semantics = [#tpu.dimension_semantics<arbitrary>], iteration_bounds = array<i64: 1>, scalar_prefetch = 0 : i64, scratch_operands = 0 : i64, tpu.core_type = #tpu.core_type<tc>, window_params = [{pipeline_mode = #tpu.pipeline_mode<synchronous>, transform_indices = @transform_0, window_bounds = array<i64: 8, 12>}, {pipeline_mode = #tpu.pipeline_mode<synchronous>, transform_indices = @transform_1, window_bounds = array<i64: 12, 128>}, {pipeline_mode = #tpu.pipeline_mode<synchronous>, transform_indices = @transform_2, window_bounds = array<i64: 8, 1>}, {pipeline_mode = #tpu.pipeline_mode<synchronous>, transform_indices = @transform_3, window_bounds = array<i64: 8, 1>}, {pipeline_mode = #tpu.pipeline_mode<synchronous>, transform_indices = @transform_4, window_bounds = array<i64: 8, 128>}]} {
    %c0 = arith.constant 0 : index
    %c0_0 = arith.constant 0 : index
    %0 = vector.load %arg1[%c0, %c0_0] : memref<8x12xf32, #tpu.memory_space<vmem>>, vector<8x12xf32>
    %c0_1 = arith.constant 0 : index
    %c0_2 = arith.constant 0 : index
    %1 = vector.load %arg2[%c0_1, %c0_2] : memref<12x128xf32, #tpu.memory_space<vmem>>, vector<12x128xf32>
    %cst = arith.constant dense<0.000000e+00> : vector<8x128xf32>
    %2 = tpu.matmul %0, %1, %cst {dimension_numbers = #tpu.dot_dimension_numbers<[1], [0], [0], [1], [0, 0, 1, 1], [], []>} : vector<8x12xf32>, vector<12x128xf32>, vector<8x128xf32> -> vector<8x128xf32>
    %cst_3 = arith.constant dense<0.000000e+00> : vector<8xf32>
    %3 = vector.multi_reduction <add>, %2, %cst_3 [1] : vector<8x128xf32> to vector<8xf32>
    %4 = vector.shape_cast %3 : vector<8xf32> to vector<8x1xf32>
    %5 = arith.mulf %2, %2 : vector<8x128xf32>
    %cst_4 = arith.constant dense<0.000000e+00> : vector<8xf32>
    %6 = vector.multi_reduction <add>, %5, %cst_4 [1] : vector<8x128xf32> to vector<8xf32>
    %7 = vector.shape_cast %6 : vector<8xf32> to vector<8x1xf32>
    %cst_5 = arith.constant 0.0357142873 : f32
    %8 = vector.broadcast %cst_5 : f32 to vector<8x1xf32>
    %9 = arith.mulf %4, %8 : vector<8x1xf32>
    %cst_6 = arith.constant 0.0357142873 : f32
    %10 = vector.broadcast %cst_6 : f32 to vector<8x1xf32>
    %11 = arith.mulf %7, %10 : vector<8x1xf32>
    %12 = arith.mulf %9, %9 : vector<8x1xf32>
    %13 = arith.subf %11, %12 : vector<8x1xf32>
    %cst_7 = arith.constant 0.000000e+00 : f32
    %14 = vector.broadcast %cst_7 : f32 to vector<8x1xf32>
    %15 = arith.maximumf %13, %14 : vector<8x1xf32>
    %cst_8 = arith.constant 9.99999974E-6 : f32
    %16 = vector.broadcast %cst_8 : f32 to vector<8x1xf32>
    %17 = arith.addf %15, %16 : vector<8x1xf32>
    %18 = math.rsqrt %17 : vector<8x1xf32>
    %c0_9 = arith.constant 0 : index
    %c0_10 = arith.constant 0 : index
    %19 = vector.load %arg3[%c0_9, %c0_10] : memref<8x1xf32, #tpu.memory_space<vmem>>, vector<8x1xf32>
    %20 = arith.mulf %19, %18 : vector<8x1xf32>
    %c0_11 = arith.constant 0 : index
    %c0_12 = arith.constant 0 : index
    %21 = vector.load %arg4[%c0_11, %c0_12] : memref<8x1xf32, #tpu.memory_space<vmem>>, vector<8x1xf32>
    %22 = arith.mulf %9, %20 : vector<8x1xf32>
    %23 = arith.subf %21, %22 : vector<8x1xf32>
    %24 = vector.broadcast %20 : vector<8x1xf32> to vector<8x128xf32>
    %25 = arith.mulf %2, %24 : vector<8x128xf32>
    %26 = vector.broadcast %23 : vector<8x1xf32> to vector<8x128xf32>
    %27 = arith.addf %25, %26 : vector<8x128xf32>
    %cst_13 = arith.constant 0.000000e+00 : f32
    %28 = vector.broadcast %cst_13 : f32 to vector<8x128xf32>
    %29 = arith.maximumf %27, %28 : vector<8x128xf32>
    %c0_14 = arith.constant 0 : index
    %c0_15 = arith.constant 0 : index
    %30 = vector.load %arg5[%c0_14, %c0_15] : memref<8x128xf32, #tpu.memory_space<vmem>>, vector<8x128xf32>
    tpu.vector_store %arg5[%c0_14, %c0_15], %29 {strides = array<i32>} : memref<8x128xf32, #tpu.memory_space<vmem>>, vector<8x128xf32>,
    return
  }
  func.func @transform_0(%arg0: i32) -> (i32, i32) {
    %c0_i32 = arith.constant 0 : i32
    %c0_i32_0 = arith.constant 0 : i32
    %c0_i32_1 = arith.constant 0 : i32
    return %c0_i32, %c0_i32_0 : i32, i32
  }
  func.func @transform_1(%arg0: i32) -> (i32, i32) {
    %c0_i32 = arith.constant 0 : i32
    %c0_i32_0 = arith.constant 0 : i32
    %c0_i32_1 = arith.constant 0 : i32
    return %c0_i32, %c0_i32_0 : i32, i32
  }
  func.func @transform_2(%arg0: i32) -> (i32, i32) {
    %c0_i32 = arith.constant 0 : i32
    %c0_i32_0 = arith.constant 0 : i32
    %c0_i32_1 = arith.constant 0 : i32
    return %c0_i32, %c0_i32_0 : i32, i32
  }
  func.func @transform_3(%arg0: i32) -> (i32, i32) {
    %c0_i32 = arith.constant 0 : i32
    %c0_i32_0 = arith.constant 0 : i32
    %c0_i32_1 = arith.constant 0 : i32
    return %c0_i32, %c0_i32_0 : i32, i32
  }
  func.func @transform_4(%arg0: i32) -> (i32, i32) {
    %c0_i32 = arith.constant 0 : i32
    %c0_i32_0 = arith.constant 0 : i32
    %c0_i32_1 = arith.constant 0 : i32
    return %c0_i32, %c0_i32_0 : i32, i32
  }
}

</mosaic_0001>

<llo_original>
// kernel: tpu_custom_call.1
$region0: #{tpu_custom_call.1}
  #allocation0 [shape = 'u32[]', space=smem, size = 0x4, offset = 0x4, fixed_abs, tag = 'smem constant byte address 0x4 - core index']
  #allocation1 [shape = 'u32[144,128]{1,0:T(1,128)}', space=vmem, size = 0x12000, scoped, tag = 'internal scratch']
  %s0 = inlined_call_operand.hbm [shape: f32[8,12], index: 0, kind: input, shape index: {}]
  %s1 = inlined_call_operand.vmem [shape: f32[12,128], index: 1, kind: input, shape index: {}]
  %s2 = inlined_call_operand.vmem [shape: f32[8,1], index: 2, kind: input, shape index: {}]
  %s3 = inlined_call_operand.vmem [shape: f32[8,1], index: 3, kind: input, shape index: {}]
  %s4 = inlined_call_operand.hbm [shape: f32[8,128], index: 4, kind: output, shape index: {}]
  %s5 = sld [smem:[#allocation0]]
  $region30: #{tpu_custom_call.1} parent=0
    _
  %s7 = ssub.s32 1, %s5
  %s8 = scalar_select 0, %s7, %s5
  $region1: #{tpu_custom_call.1} parent=0
    #allocation2 [shape = 'u8[4096]{0}', space=vmem, size = 0x1000, scoped, tag = 'input window, operand 0, single buffered']
    #allocation3 [shape = 's32[1]{0}', space=sflag, size = 0x4, scoped, tag = 'scoped memory for tpu_custom_call.1']
    #allocation4 [shape = 's32[1]{0}', space=sflag, size = 0x4, scoped, tag = 'scoped memory for tpu_custom_call.1']
    #allocation5 [shape = 'u8[4096]{0}', space=vmem, size = 0x1000, scoped, tag = 'output window, operand 0, single buffered']
    %9 = vsyncpa [#allocation3], 0
    %10 = vsyncpa [#allocation4], 0
    // Predicated region
    $region2: #{tpu_custom_call.1} parent=1 // pred_check
      _
    $region3: #{tpu_custom_call.1} parent=1 // pred_check_branch
      %12 = sbr.rel (0) target = $region5
    $region4: #{tpu_custom_call.1} parent=1 // pred_region
      %s14 = ssub.s32 128, 128
      %15 = vsyncadd [#allocation3], %s14
      %s17 = sshll.u32 [#allocation2], 4
      %s18 = int_to_ptr.vmem [resolvable:$true] %s17
      %20 = dma.hbm_to_vmem [thread:$0]  %s0, 128, %s18, [#allocation3]
    $region5: #{tpu_custom_call.1} parent=1 // pred_fallthru
      _
    // Predicated region
    $region6: #{tpu_custom_call.1} parent=1 // pred_check
      _
    $region7: #{tpu_custom_call.1} parent=1 // pred_check_branch
      %22 = sbr.rel (0) target = $region9
    $region8: #{tpu_custom_call.1} parent=1 // pred_region
      _
    $region9: #{tpu_custom_call.1} parent=1 // pred_fallthru
      _
    // Predicated region
    $region10: #{tpu_custom_call.1} parent=1 // pred_check
      _
    $region11: #{tpu_custom_call.1} parent=1 // pred_check_branch
      %24 = sbr.rel (0) target = $region13
    $region12: #{tpu_custom_call.1} parent=1 // pred_region
      _
    $region13: #{tpu_custom_call.1} parent=1 // pred_fallthru
      _
    // Predicated region
    $region14: #{tpu_custom_call.1} parent=1 // pred_check
      _
    $region15: #{tpu_custom_call.1} parent=1 // pred_check_branch
      %26 = sbr.rel (0) target = $region17
    $region16: #{tpu_custom_call.1} parent=1 // pred_region
      _
    $region17: #{tpu_custom_call.1} parent=1 // pred_fallthru
      _
    // Predicated region
    $region18: #{tpu_custom_call.1} parent=1 // pred_check
      _
    $region19: #{tpu_custom_call.1} parent=1 // pred_check_branch
      %28 = sbr.rel (0) target = $region21
    $region20: #{tpu_custom_call.1} parent=1 // pred_region
      %29 = dma.done [#allocation3], 128
    $region21: #{tpu_custom_call.1} parent=1 // pred_fallthru
      _
    %v30 = vld [vmem:[#allocation2] sm:$0xff]
    %v31 = vld [vmem:[%s1] sm:$0xff]
    %v32 = vld [vmem:[%s1 + $0x8] sm:$0xf]
    %vm33 = vcmask 97280
    %v35 = vsel %vm33, %v30, 0
    %vm37 = vcmask 1043456
    %v39 = vsel %vm37, %v32, 0
    %41 = vmatprep.subr.mxu0 0.0
    %42 = vmatpush1.msra.mxu0 %v31
    %43 = vmatprep.subr.mxu0 0.0
    %44 = vmatpush1.msra.mxu0 %v39
    %45 = vmatprep.subr.mxu0 0.0
    %46 = vmatpush1.msra.mxu0 0.0
    %47 = vmatprep.subr.mxu0 0.0
    %48 = vmatpush1.msra.mxu0 0.0
    %49 = vmatprep.subr.mxu0 0.0
    %50 = vmatpush1.msra.mxu0 0.0
    %51 = vmatprep.subr.mxu0 0.0
    %52 = vmatpush1.msra.mxu0 0.0
    %53 = vmatprep.subr.mxu0 0.0
    %54 = vmatpush1.msra.mxu0 0.0
    %55 = vmatprep.subr.mxu0 0.0
    %56 = vmatpush1.msra.mxu0 0.0
    %57 = vmatprep.subr.mxu0 0.0
    %58 = vmatpush1.msra.mxu0 0.0
    %59 = vmatprep.subr.mxu0 0.0
    %60 = vmatpush1.msra.mxu0 0.0
    %61 = vmatprep.subr.mxu0 0.0
    %62 = vmatpush1.msra.mxu0 0.0
    %63 = vmatprep.subr.mxu0 0.0
    %64 = vmatpush1.msra.mxu0 0.0
    %65 = vmatprep.subr.mxu0 0.0
    %66 = vmatpush1.msra.mxu0 0.0
    %67 = vmatprep.subr.mxu0 0.0
    %68 = vmatpush1.msra.mxu0 0.0
    %69 = vmatprep.subr.mxu0 0.0
    %70 = vmatpush1.msra.mxu0 0.0
    %71 = vmatprep.subr.mxu0 0.0
    %72 = vmatpush1.msra.mxu0 0.0
    %73 = vmatprep.subr.mxu0 0.0
    %74 = vmatpush1.msra.mxu0 0.0
    %75 = vmatprep.subr.mxu0 0.0
    %76 = vmatpush1.msra.mxu0 0.0
    %77 = vmatprep.subr.mxu0 0.0
    %78 = vmatpush1.msra.mxu0 0.0
    %79 = vmatprep.subr.mxu0 0.0
    %80 = vmatpush1.msra.mxu0 0.0
    %81 = vmatprep.subr.mxu0 0.0
    %82 = vmatpush1.msra.mxu0 0.0
    %83 = vmatprep.subr.mxu0 0.0
    %84 = vmatpush1.msra.mxu0 0.0
    %85 = vmatprep.subr.mxu0 0.0
    %86 = vmatpush1.msra.mxu0 0.0
    %87 = vmatprep.subr.mxu0 0.0
    %88 = vmatpush1.msra.mxu0 0.0
    %89 = vmatprep.subr.mxu0 0.0
    %90 = vmatpush1.msra.mxu0 0.0
    %91 = vmatprep.subr.mxu0 0.0
    %92 = vmatpush1.msra.mxu0 0.0
    %93 = vmatprep.subr.mxu0 0.0
    %94 = vmatpush1.msra.mxu0 0.0
    %95 = vmatprep.subr.mxu0 0.0
    %96 = vmatpush1.msra.mxu0 0.0
    %97 = vmatprep.subr.mxu0 0.0
    %98 = vmatpush1.msra.mxu0 0.0
    %99 = vmatprep.subr.mxu0 0.0
    %100 = vmatpush1.msra.mxu0 0.0
    %101 = vmatprep.subr.mxu0 0.0
    %102 = vmatpush1.msra.mxu0 0.0
    %103 = vmatprep.subr.mxu0 0.0
    %104 = vmatpush1.msra.mxu0 0.0
    %105 = vmatprep.mubr.f32.mxu0 0.0
    %106 = vmatmul.mubr.f32.gmra.mrb[0].mxu0 %v35
    %v107 = vpop.f32.mrb[0].mxu0
    %v108 = vadd.f32 0.0, %v107
    %v109 = vpop.f32.mrb[0].mxu0
    %110 = vdwg.mxu0
    %111 = vadd.xlane.f32.xlu0 %v108
    %v112 = vpop.xlane.xlu0 %111
    %v113 = vmul.f32 %v108, %v108
    %114 = vadd.xlane.f32.xlu0 %v113
    %v115 = vpop.xlane.xlu0 %114
    %v116 = vmul.f32 %v112, 0.035714287
    %v117 = vmul.f32 %v115, 0.035714287
    %v118 = vmul.f32 %v116, %v116
    %v119 = vsub.f32 %v117, %v118
    %v120 = vmax.f32 %v119, 0.0
    %v121 = vadd.f32 %v120, 1e-05
    %v122 = vrsqrt.pop %v121
    %v123 = vld [vmem:[%s2] sm:$0xff]
    %v124 = vmul.f32 %v123, %v122
    %v125 = vld [vmem:[%s3] sm:$0xff]
    %v126 = vmul.f32 %v116, %v124
    %v127 = vsub.f32 %v125, %v126
    %129 = vset.pattern.permute.xlu0 0
    %130 = vperm.xlu0 %129, %v124
    %v131 = vpop.permute.xlu0 %130
    %v133 = vmul.f32 %v108, %v131
    %135 = vset.pattern.permute.xlu0 0
    %136 = vperm.xlu0 %135, %v127
    %v137 = vpop.permute.xlu0 %136
    %v139 = vadd.f32 %v133, %v137
    %v140 = vmax.f32 %v139, 0.0
    %141 = vst [vmem:[#allocation5] sm:$0xff] %v140
    // Predicated region
    $region22: #{tpu_custom_call.1} parent=1 // pred_check
      _
    $region23: #{tpu_custom_call.1} parent=1 // pred_check_branch
      %143 = sbr.rel (0) target = $region25
    $region24: #{tpu_custom_call.1} parent=1 // pred_region
      %s145 = ssub.s32 128, 128
      %146 = vsyncadd [#allocation4], %s145
      %s148 = sshll.u32 [#allocation5], 4
      %s149 = int_to_ptr.vmem [resolvable:$true] %s148
      %151 = dma.vmem_to_hbm [thread:$0]  %s149, 128, %s4, [#allocation4]
    $region25: #{tpu_custom_call.1} parent=1 // pred_fallthru
      _
    // Predicated region
    $region26: #{tpu_custom_call.1} parent=1 // pred_check
      _
    $region27: #{tpu_custom_call.1} parent=1 // pred_check_branch
      %153 = sbr.rel (0) target = $region29
    $region28: #{tpu_custom_call.1} parent=1 // pred_region
      %154 = dma.done [#allocation4], 128
    $region29: #{tpu_custom_call.1} parent=1 // pred_fallthru
      _
    %155 = vsyncpa [#allocation3], 1
    %156 = vsyncpa [#allocation4], 1

</llo_original>
